<compile_context>
chip_gen: v7x
topology: tpu7x:2x2x1
jax: 0.10.0
libtpu: 0.0.40
codegen_flags: <defaults>
</compile_context>

<pallas_src>
import math

import jax
import jax.numpy as jnp
from jax.experimental import pallas as pl
from jax.experimental.pallas import tpu as pltpu

_LANES = 128
_SUBLANES = 8


def _round_up(v, m):
    return ((v + m - 1) // m) * m


def _default_block_bytes():
    # Bigger DMA blocks on v7x (3.2 TB/s HBM -> amortize the ~0.35us/step grid
    # overhead); 4 MiB is already ~85-90% of the HBM roofline on v5e/v6e.
    try:
        kind = jax.devices()[0].device_kind.lower()
    except Exception:
        kind = ""
    if "v7" in kind or "7x" in kind:
        return 8 * 1024 * 1024
    return 4 * 1024 * 1024


def _make_entropy_kernel(num_classes, tile_rows, chunk_rows, num_tiles,
                         n_valid, needs_mask, in_dtype):
    """Build the per-tile kernel; all shape params are baked in statically."""
    num_chunks = tile_rows // chunk_rows
    native_max = jnp.issubdtype(jnp.dtype(in_dtype), jnp.floating)

    def chunk_entropy(x_ref, ci):
        # One `chunk_rows`-row strip: accumulators (m, s, sez) live in vregs.
        r0 = pl.multiple_of(ci * chunk_rows, chunk_rows)

        # Pass 1: running max over classes (native dtype when floating so bf16
        # stays packed on v6e/v7x), upcast to f32 once.
        m = x_ref[0, pl.ds(r0, chunk_rows), :]
        if not native_max:
            m = m.astype(jnp.float32)
        for c in range(1, num_classes):
            xc = x_ref[c, pl.ds(r0, chunk_rows), :]
            if not native_max:
                xc = xc.astype(jnp.float32)
            m = jnp.maximum(m, xc)
        m = m.astype(jnp.float32)

        # Pass 2: s = sum_c e^z and sez = sum_c z*e^z, with z = x_c - m.
        s = None
        sez = None
        for c in range(num_classes):
            z = x_ref[c, pl.ds(r0, chunk_rows), :].astype(jnp.float32) - m
            ez = jnp.exp(z)
            s = ez if s is None else s + ez
            sez = ez * z if sez is None else sez + ez * z

        # Per-position entropy: -(sum_c p log p) = log(s) - sez / s.
        # Approx EUP reciprocal + one Newton step (keeps ~f32 accuracy).
        inv_s = pl.reciprocal(s, approx=True)
        inv_s = inv_s * (2.0 - s * inv_s)
        return jnp.log(s) - sez * inv_s

    def kernel(x_ref, o_ref):
        # x_ref: (C, tile_rows, 128) block of logits (native dtype).
        # o_ref: (8, 128) per-tile partial sum of per-position entropies.
        tile = pl.program_id(0)

        def run(masked):
            if masked:
                # Position index local to a chunk (constant across chunks); the
                # per-chunk mask is one compare against a scalar limit.
                local_pos = (
                    jax.lax.broadcasted_iota(
                        jnp.int32, (chunk_rows, _LANES), 0) * _LANES
                    + jax.lax.broadcasted_iota(
                        jnp.int32, (chunk_rows, _LANES), 1)
                )
                tile_start = tile * (tile_rows * _LANES)

            def body(ci, acc):
                ent = chunk_entropy(x_ref, ci)
                if masked:
                    limit = n_valid - (tile_start + ci * (chunk_rows * _LANES))
                    ent = jnp.where(local_pos < limit, ent, jnp.float32(0.0))
                # (chunk_rows, 128) -> (8, 128): sublane-group adds (pure VPU),
                # accumulated into a single-vreg carry.
                return acc + ent.reshape(
                    chunk_rows // _SUBLANES, _SUBLANES, _LANES).sum(axis=0)

            return jax.lax.fori_loop(
                0, num_chunks, body,
                jnp.zeros((_SUBLANES, _LANES), jnp.float32))

        if not needs_mask:
            o_ref[...] = run(False)
        elif num_tiles == 1:
            o_ref[...] = run(True)
        else:
            # Only the last tile can contain padded / out-of-bounds positions.
            @pl.when(tile != num_tiles - 1)
            def _():
                o_ref[...] = run(False)

            @pl.when(tile == num_tiles - 1)
            def _():
                o_ref[...] = run(True)

    return kernel


def entropy(x, *, max_block_bytes=None):
    """Pallas implementation of Entropy().forward(x). Returns a scalar."""
    x = jnp.asarray(x)
    num_classes = x.shape[0]
    n = math.prod(x.shape[1:]) if x.ndim > 1 else 1
    itemsize = jnp.dtype(x.dtype).itemsize

    if max_block_bytes is None:
        max_block_bytes = _default_block_bytes()

    # --- tiling over the flattened batch/spatial axis ------------------------
    rows_total = pl.cdiv(n, _LANES)           # rows actually holding data
    rows_arr = max(rows_total, _SUBLANES)     # physical rows in the 3D view
    floor8 = (rows_arr // _SUBLANES) * _SUBLANES

    cap_rows = max_block_bytes // (num_classes * _LANES * itemsize)
    cap_rows = max(_SUBLANES, (cap_rows // _SUBLANES) * _SUBLANES)
    cap_rows = min(cap_rows, 4096)

    tile_rows = min(cap_rows, floor8)
    num_tiles = pl.cdiv(rows_arr, tile_rows)
    if num_tiles == 1 and floor8 >= 2 * _SUBLANES:
        # Split into >= 2 grid steps so both v7x TensorCores get work
        # (harmless on single-TC v5e/v6e).
        tile_rows = min(floor8, _round_up(pl.cdiv(rows_arr, 2), _SUBLANES))
        num_tiles = pl.cdiv(rows_arr, tile_rows)

    chunk_rows = next(c for c in (64, 32, 16, 8) if tile_rows % c == 0)
    needs_mask = (num_tiles * tile_rows * _LANES) != n

    # --- layout glue (no full-array pad copy in the aligned common case) -----
    x2 = x.reshape(num_classes, n)
    n_arr = rows_arr * _LANES
    if n_arr != n:
        # Minimal pad to the next 128-lane boundary (only for ragged N); the
        # last grid block may still be short -- Pallas clips that DMA and the
        # in-kernel mask drops the garbage rows.
        x2 = jnp.pad(x2, ((0, 0), (0, n_arr - n)))
    x3 = x2.reshape(num_classes, rows_arr, _LANES)

    kernel = _make_entropy_kernel(num_classes, tile_rows, chunk_rows,
                                  num_tiles, n, needs_mask, x.dtype)

    in_block_bytes = num_classes * tile_rows * _LANES * itemsize
    vmem_limit = int(min(48 * 1024 * 1024,
                         2 * in_block_bytes + 16 * 1024 * 1024))

    cost = pl.CostEstimate(
        flops=8 * num_classes * n,
        transcendentals=(num_classes + 2) * n,
        bytes_accessed=num_classes * n * itemsize
        + num_tiles * _SUBLANES * _LANES * 4,
    )

    partials = pl.pallas_call(
        kernel,
        out_shape=jax.ShapeDtypeStruct((num_tiles * _SUBLANES, _LANES),
                                       jnp.float32),
        grid=(num_tiles,),
        in_specs=[
            pl.BlockSpec((num_classes, tile_rows, _LANES), lambda i: (0, i, 0))
        ],
        out_specs=pl.BlockSpec((_SUBLANES, _LANES), lambda i: (i, 0)),
        compiler_params=pltpu.CompilerParams(
            dimension_semantics=("parallel",),
            vmem_limit_bytes=vmem_limit,
        ),
        cost_estimate=cost,
    )(x3)

    # Final reduction over the tiny per-tile partials + global-N normalization.
    return jnp.sum(partials) / jnp.float32(n)


def _entropy_ref(x):
    # Pure-JAX reference mirroring the PyTorch semantics.
    sm = jax.nn.softmax(x, axis=0)
    lsm = jax.nn.log_softmax(x, axis=0)
    return -(sm * lsm).sum(axis=0).mean()


if __name__ == "__main__":
    root = jax.random.PRNGKey(0)
    k1, k2, k3, k4 = jax.random.split(root, 4)

    # 1) Primary case: softmax axis first (4 "classes"), small spatial rest.
    x = jax.random.normal(k1, (4, 2, 16, 16), dtype=jnp.float32)
    result = jax.block_until_ready(entropy(x))
    ref = _entropy_ref(x)
    assert jnp.allclose(result, ref, rtol=1e-5, atol=1e-5), (result, ref)

    # 2) Ragged case: odd class count and N not a multiple of 128 (exercises
    #    the minimal 128-pad path + in-kernel mask + global-N normalization).
    x2 = jax.random.normal(k2, (19, 3, 10, 7), dtype=jnp.float32)
    result2 = jax.block_until_ready(entropy(x2))
    ref2 = _entropy_ref(x2)
    assert jnp.allclose(result2, ref2, rtol=1e-5, atol=1e-5), (result2, ref2)

    # 3) Aligned multi-tile case: two "parallel" tiles, strip-mined chunks,
    #    no padding copy and no mask.
    x3 = jax.random.normal(k3, (4, 8, 36, 128), dtype=jnp.float32)
    result3 = jax.block_until_ready(entropy(x3))
    ref3 = _entropy_ref(x3)
    assert jnp.allclose(result3, ref3, rtol=1e-5, atol=1e-5), (result3, ref3)

    # 4) 128-aligned but not tile-aligned N: exercises the clipped boundary
    #    block (no pad copy) with the last-tile-only mask.
    x4 = jax.random.normal(k4, (4, 9, 128), dtype=jnp.float32)
    result4 = jax.block_until_ready(entropy(x4))
    ref4 = _entropy_ref(x4)
    assert jnp.allclose(result4, ref4, rtol=1e-5, atol=1e-5), (result4, ref4)

    print("KERNEL_OK")
</pallas_src>

<mosaic_0001>
module attributes {stable_mosaic.version = 11 : i64} {
  func.func @kernel(%arg0: i32, %arg1: memref<4x8x128xf32, #tpu.memory_space<vmem>>, %arg2: memref<8x128xf32, #tpu.memory_space<vmem>>) attributes {dimension_semantics = [#tpu.dimension_semantics<parallel>], iteration_bounds = array<i64: 1>, scalar_prefetch = 0 : i64, scratch_operands = 0 : i64, tpu.core_type = #tpu.core_type<tc>, window_params = [{transform_indices = @transform_0, window_bounds = array<i64: 4, 8, 128>}, {transform_indices = @transform_1, window_bounds = array<i64: 8, 128>}]} {
    %0 = tpu.iota {dimensions = array<i32: 0>} : vector<8x128xi32>
    %c128_i32 = arith.constant 128 : i32
    %1 = vector.broadcast %c128_i32 : i32 to vector<8x128xi32>
    %2 = arith.muli %0, %1 : vector<8x128xi32>
    %3 = tpu.iota {dimensions = array<i32: 1>} : vector<8x128xi32>
    %4 = arith.addi %2, %3 : vector<8x128xi32>
    %c1024_i32 = arith.constant 1024 : i32
    %5 = arith.muli %arg0, %c1024_i32 : i32
    %cst = arith.constant 0.000000e+00 : f32
    %6 = vector.broadcast %cst : f32 to vector<8x128xf32>
    %c0_i32 = arith.constant 0 : i32
    %c8_i32 = arith.constant 8 : i32
    %7 = arith.muli %c0_i32, %c8_i32 : i32
    %8 = tpu.assume_multiple %7, 8 : i32
    %c0 = arith.constant 0 : index
    %9 = arith.index_cast %8 : i32 to index
    %c0_0 = arith.constant 0 : index
    %10 = vector.load %arg1[%c0, %9, %c0_0] : memref<4x8x128xf32, #tpu.memory_space<vmem>>, vector<1x8x128xf32>
    %11 = vector.shape_cast %10 : vector<1x8x128xf32> to vector<8x128xf32>
    %c1 = arith.constant 1 : index
    %12 = arith.index_cast %8 : i32 to index
    %c0_1 = arith.constant 0 : index
    %13 = vector.load %arg1[%c1, %12, %c0_1] : memref<4x8x128xf32, #tpu.memory_space<vmem>>, vector<1x8x128xf32>
    %14 = vector.shape_cast %13 : vector<1x8x128xf32> to vector<8x128xf32>
    %15 = arith.maximumf %11, %14 : vector<8x128xf32>
    %c2 = arith.constant 2 : index
    %16 = arith.index_cast %8 : i32 to index
    %c0_2 = arith.constant 0 : index
    %17 = vector.load %arg1[%c2, %16, %c0_2] : memref<4x8x128xf32, #tpu.memory_space<vmem>>, vector<1x8x128xf32>
    %18 = vector.shape_cast %17 : vector<1x8x128xf32> to vector<8x128xf32>
    %19 = arith.maximumf %15, %18 : vector<8x128xf32>
    %c3 = arith.constant 3 : index
    %20 = arith.index_cast %8 : i32 to index
    %c0_3 = arith.constant 0 : index
    %21 = vector.load %arg1[%c3, %20, %c0_3] : memref<4x8x128xf32, #tpu.memory_space<vmem>>, vector<1x8x128xf32>
    %22 = vector.shape_cast %21 : vector<1x8x128xf32> to vector<8x128xf32>
    %23 = arith.maximumf %19, %22 : vector<8x128xf32>
    %c0_4 = arith.constant 0 : index
    %24 = arith.index_cast %8 : i32 to index
    %c0_5 = arith.constant 0 : index
    %25 = vector.load %arg1[%c0_4, %24, %c0_5] : memref<4x8x128xf32, #tpu.memory_space<vmem>>, vector<1x8x128xf32>
    %26 = vector.shape_cast %25 : vector<1x8x128xf32> to vector<8x128xf32>
    %27 = arith.subf %26, %23 : vector<8x128xf32>
    %28 = math.exp %27 : vector<8x128xf32>
    %29 = arith.mulf %28, %27 : vector<8x128xf32>
    %c1_6 = arith.constant 1 : index
    %30 = arith.index_cast %8 : i32 to index
    %c0_7 = arith.constant 0 : index
    %31 = vector.load %arg1[%c1_6, %30, %c0_7] : memref<4x8x128xf32, #tpu.memory_space<vmem>>, vector<1x8x128xf32>
    %32 = vector.shape_cast %31 : vector<1x8x128xf32> to vector<8x128xf32>
    %33 = arith.subf %32, %23 : vector<8x128xf32>
    %34 = math.exp %33 : vector<8x128xf32>
    %35 = arith.addf %28, %34 : vector<8x128xf32>
    %36 = arith.mulf %34, %33 : vector<8x128xf32>
    %37 = arith.addf %29, %36 : vector<8x128xf32>
    %c2_8 = arith.constant 2 : index
    %38 = arith.index_cast %8 : i32 to index
    %c0_9 = arith.constant 0 : index
    %39 = vector.load %arg1[%c2_8, %38, %c0_9] : memref<4x8x128xf32, #tpu.memory_space<vmem>>, vector<1x8x128xf32>
    %40 = vector.shape_cast %39 : vector<1x8x128xf32> to vector<8x128xf32>
    %41 = arith.subf %40, %23 : vector<8x128xf32>
    %42 = math.exp %41 : vector<8x128xf32>
    %43 = arith.addf %35, %42 : vector<8x128xf32>
    %44 = arith.mulf %42, %41 : vector<8x128xf32>
    %45 = arith.addf %37, %44 : vector<8x128xf32>
    %c3_10 = arith.constant 3 : index
    %46 = arith.index_cast %8 : i32 to index
    %c0_11 = arith.constant 0 : index
    %47 = vector.load %arg1[%c3_10, %46, %c0_11] : memref<4x8x128xf32, #tpu.memory_space<vmem>>, vector<1x8x128xf32>
    %48 = vector.shape_cast %47 : vector<1x8x128xf32> to vector<8x128xf32>
    %49 = arith.subf %48, %23 : vector<8x128xf32>
    %50 = math.exp %49 : vector<8x128xf32>
    %51 = arith.addf %43, %50 : vector<8x128xf32>
    %52 = arith.mulf %50, %49 : vector<8x128xf32>
    %53 = arith.addf %45, %52 : vector<8x128xf32>
    %54 = tpu.reciprocal %51 {approx = true} : vector<8x128xf32> -> vector<8x128xf32>
    %55 = arith.mulf %51, %54 : vector<8x128xf32>
    %cst_12 = arith.constant 2.000000e+00 : f32
    %56 = vector.broadcast %cst_12 : f32 to vector<8x128xf32>
    %57 = arith.subf %56, %55 : vector<8x128xf32>
    %58 = arith.mulf %54, %57 : vector<8x128xf32>
    %59 = math.log %51 : vector<8x128xf32>
    %60 = arith.mulf %53, %58 : vector<8x128xf32>
    %61 = arith.subf %59, %60 : vector<8x128xf32>
    %c1024_i32_13 = arith.constant 1024 : i32
    %62 = arith.muli %c0_i32, %c1024_i32_13 : i32
    %63 = arith.addi %5, %62 : i32
    %c512_i32 = arith.constant 512 : i32
    %64 = arith.subi %c512_i32, %63 : i32
    %65 = vector.broadcast %64 : i32 to vector<8x128xi32>
    %66 = arith.cmpi slt, %4, %65 : vector<8x128xi32>
    %cst_14 = arith.constant 0.000000e+00 : f32
    %67 = vector.broadcast %cst_14 : f32 to vector<8x128xf32>
    %68 = arith.select %66, %61, %67 : vector<8x128xi1>, vector<8x128xf32>
    %69 = vector.shape_cast %68 : vector<8x128xf32> to vector<1x8x128xf32>
    %cst_15 = arith.constant dense<0.000000e+00> : vector<8x128xf32>
    %70 = vector.multi_reduction <add>, %69, %cst_15 [0] : vector<1x8x128xf32> to vector<8x128xf32>
    %71 = arith.addf %6, %70 : vector<8x128xf32>
    %c1_i32 = arith.constant 1 : i32
    %c0_16 = arith.constant 0 : index
    %c0_17 = arith.constant 0 : index
    %72 = vector.load %arg2[%c0_16, %c0_17] : memref<8x128xf32, #tpu.memory_space<vmem>>, vector<8x128xf32>
    tpu.vector_store %arg2[%c0_16, %c0_17], %71 {strides = array<i32>} : memref<8x128xf32, #tpu.memory_space<vmem>>, vector<8x128xf32>,
    return
  }
  func.func @transform_0(%arg0: i32) -> (i32, i32, i32) {
    %c0_i32 = arith.constant 0 : i32
    %c0_i32_0 = arith.constant 0 : i32
    %c0_i32_1 = arith.constant 0 : i32
    return %c0_i32, %arg0, %c0_i32_0 : i32, i32, i32
  }
  func.func @transform_1(%arg0: i32) -> (i32, i32) {
    %c0_i32 = arith.constant 0 : i32
    %c0_i32_0 = arith.constant 0 : i32
    return %arg0, %c0_i32 : i32, i32
  }
}

</mosaic_0001>

<llo_original>
// kernel: tpu_custom_call.1
$region0: #{tpu_custom_call.1}
  #allocation0 [shape = 'u32[]', space=smem, size = 0x4, offset = 0x4, fixed_abs, tag = 'smem constant byte address 0x4 - core index']
  #allocation1 [shape = 'u32[144,128]{1,0:T(1,128)}', space=vmem, size = 0x12000, scoped, tag = 'internal scratch']
  %s0 = inlined_call_operand.hbm [shape: f32[4,8,128], index: 0, kind: input, shape index: {}]
  %s1 = inlined_call_operand.hbm [shape: f32[8,128], index: 1, kind: output, shape index: {}]
  %s2 = sld [smem:[#allocation0]]
  $region18: #{tpu_custom_call.1} parent=0
    _
  %s4 = ssub.s32 1, %s2
  %s5 = scalar_select 0, %s4, %s2
  $region1: #{tpu_custom_call.1} parent=0
    #allocation2 [shape = 'u8[16384]{0}', space=vmem, size = 0x4000, scoped, tag = 'input window, operand 0, single buffered']
    #allocation3 [shape = 's32[1]{0}', space=sflag, size = 0x4, scoped, tag = 'scoped memory for tpu_custom_call.1']
    #allocation4 [shape = 's32[1]{0}', space=sflag, size = 0x4, scoped, tag = 'scoped memory for tpu_custom_call.1']
    #allocation5 [shape = 'u8[4096]{0}', space=vmem, size = 0x1000, scoped, tag = 'output window, operand 0, single buffered']
    %6 = vsyncpa [#allocation3], 0
    %7 = vsyncpa [#allocation4], 0
    // Predicated region
    $region2: #{tpu_custom_call.1} parent=1 // pred_check
      _
    $region3: #{tpu_custom_call.1} parent=1 // pred_check_branch
      %9 = sbr.rel (0) target = $region5
    $region4: #{tpu_custom_call.1} parent=1 // pred_region
      %s11 = ssub.s32 512, 512
      %12 = vsyncadd [#allocation3], %s11
      %s13 = sshll.u32 [#allocation2], 4
      %s14 = int_to_ptr.vmem [resolvable:$true] %s13
      %19 = dma.hbm_to_vmem [thread:$0]  %s0, 512, %s14, [#allocation3], 128, 128, 8
    $region5: #{tpu_custom_call.1} parent=1 // pred_fallthru
      _
    // Predicated region
    $region6: #{tpu_custom_call.1} parent=1 // pred_check
      _
    $region7: #{tpu_custom_call.1} parent=1 // pred_check_branch
      %21 = sbr.rel (0) target = $region9
    $region8: #{tpu_custom_call.1} parent=1 // pred_region
      %22 = dma.done [#allocation3], 512
    $region9: #{tpu_custom_call.1} parent=1 // pred_fallthru
      _
    %v23 = vlaneseq
    %v24 = vshrl.u32 %v23, 7
    %v25 = vmul.u32 %v24, 128
    %v26 = vlaneseq
    %v27 = vand.u32 %v26, 127
    %v28 = vadd.s32 %v25, %v27
    %s29 = smul.u32 0, 1024
    %v30 = vld [vmem:[#allocation2] sm:$0xff]
    %s31 = sadd.s32 0, 8
    %s32 = scalar_lea.vmem [#allocation2], %s31
    %v33 = vld [vmem:[%s32] sm:$0xff]
    %v34 = vmax.f32 %v30, %v33
    %s35 = sadd.s32 0, 16
    %s36 = scalar_lea.vmem [#allocation2], %s35
    %v37 = vld [vmem:[%s36] sm:$0xff]
    %v38 = vmax.f32 %v34, %v37
    %s39 = sadd.s32 0, 24
    %s40 = scalar_lea.vmem [#allocation2], %s39
    %v41 = vld [vmem:[%s40] sm:$0xff]
    %v42 = vmax.f32 %v38, %v41
    %v43 = vsub.f32 %v30, %v42
    %v44 = vmul.f32 %v43, 1.442695
    %v45 = vpow.pop %v44
    %v46 = vmul.f32 %v45, %v43
    %v47 = vsub.f32 %v33, %v42
    %v48 = vmul.f32 %v47, 1.442695
    %v49 = vpow.pop %v48
    %v50 = vadd.f32 %v45, %v49
    %v51 = vmul.f32 %v49, %v47
    %v52 = vadd.f32 %v46, %v51
    %v53 = vsub.f32 %v37, %v42
    %v54 = vmul.f32 %v53, 1.442695
    %v55 = vpow.pop %v54
    %v56 = vadd.f32 %v50, %v55
    %v57 = vmul.f32 %v55, %v53
    %v58 = vadd.f32 %v52, %v57
    %v59 = vsub.f32 %v41, %v42
    %v60 = vmul.f32 %v59, 1.442695
    %v61 = vpow.pop %v60
    %v62 = vadd.f32 %v56, %v61
    %v63 = vmul.f32 %v61, %v59
    %v64 = vadd.f32 %v58, %v63
    %v65 = vrcp.pop %v62
    %v66 = vmul.f32 %v62, %v65
    %v67 = vsub.f32 2.0, %v66
    %v68 = vmul.f32 %v65, %v67
    %v69 = vlog2.pop %v62
    %v70 = vmul.f32 %v69, 0.6931472
    %v71 = vmul.f32 %v64, %v68
    %v72 = vsub.f32 %v70, %v71
    %s73 = ssub.s32 512, %s29
    %v74 = vstv %s73
    %vm75 = vcmp.lt.s32.totalorder %v28, %v74
    %v76 = vsel %vm75, %v72, 0.0
    %v77 = vadd.f32 %v76, 0.0
    %v78 = vadd.f32 %v77, 0.0
    %79 = vst [vmem:[#allocation5] sm:$0xff] %v78
    // Predicated region
    $region10: #{tpu_custom_call.1} parent=1 // pred_check
      _
    $region11: #{tpu_custom_call.1} parent=1 // pred_check_branch
      %81 = sbr.rel (0) target = $region13
    $region12: #{tpu_custom_call.1} parent=1 // pred_region
      %s83 = ssub.s32 128, 128
      %84 = vsyncadd [#allocation4], %s83
      %s86 = sshll.u32 [#allocation5], 4
      %s87 = int_to_ptr.vmem [resolvable:$true] %s86
      %89 = dma.vmem_to_hbm [thread:$0]  %s87, 128, %s1, [#allocation4]
    $region13: #{tpu_custom_call.1} parent=1 // pred_fallthru
      _
    // Predicated region
    $region14: #{tpu_custom_call.1} parent=1 // pred_check
      _
    $region15: #{tpu_custom_call.1} parent=1 // pred_check_branch
      %91 = sbr.rel (0) target = $region17
    $region16: #{tpu_custom_call.1} parent=1 // pred_region
      %92 = dma.done [#allocation4], 128
    $region17: #{tpu_custom_call.1} parent=1 // pred_fallthru
      _
    %93 = vsyncpa [#allocation3], 1
    %94 = vsyncpa [#allocation4], 1

</llo_original>
